<compile_context>
chip_gen: v7x
topology: tpu7x:2x2x1
jax: 0.10.0
libtpu: 0.0.40
codegen_flags: <defaults>
</compile_context>

<pallas_src>
import functools

import jax
import jax.numpy as jnp
from jax.experimental import pallas as pl
from jax.experimental.pallas import tpu as pltpu


def _leaky_relu(x, slope=0.2):
    return jnp.where(x > 0, x, slope * x)


def _round_up(x, m):
    return ((x + m - 1) // m) * m


# ----------------------------- kernels ------------------------------------- #
def _mlp_res_kernel_shortcut(x_ref, w1_ref, b1_ref, w2_ref, b2_ref, ws_ref, bs_ref,
                             o_ref, *, final_act):
    # out = Linear2(LeakyReLU(Linear1(x))) + Linear_s(x) ; optional LeakyReLU
    x = x_ref[...]
    h = jnp.dot(x, w1_ref[...], preferred_element_type=jnp.float32) + b1_ref[...]
    h = _leaky_relu(h)                                   # epilogue stays in f32 (v5e VPU)
    out = jnp.dot(h.astype(w2_ref.dtype), w2_ref[...],
                  preferred_element_type=jnp.float32) + b2_ref[...]
    sc = jnp.dot(x, ws_ref[...], preferred_element_type=jnp.float32) + bs_ref[...]
    out = out + sc
    if final_act:
        out = _leaky_relu(out)
    o_ref[...] = out.astype(o_ref.dtype)


def _mlp_res_kernel_identity(x_ref, w1_ref, b1_ref, w2_ref, b2_ref,
                             o_ref, *, final_act):
    # out = Linear2(LeakyReLU(Linear1(x))) + x ; optional LeakyReLU
    x = x_ref[...]
    h = jnp.dot(x, w1_ref[...], preferred_element_type=jnp.float32) + b1_ref[...]
    h = _leaky_relu(h)
    out = jnp.dot(h.astype(w2_ref.dtype), w2_ref[...],
                  preferred_element_type=jnp.float32) + b2_ref[...]
    out = out + x.astype(jnp.float32)
    if final_act:
        out = _leaky_relu(out)
    o_ref[...] = out.astype(o_ref.dtype)     # fixed: cast to the *output* ref dtype


# ----------------------------- wrapper -------------------------------------- #
def mlp_res_forward(x, params, *, final_act=True, tm=256,
                    compute_dtype=jnp.float32, lane_multiple=128,
                    vmem_budget_bytes=20 * 1024 * 1024):
    """x: (B, N, in_dim). params: dict of (transposed) weights & biases.

    - tm: requested row tile (rows of the flattened (M, C) input per grid step).
    - compute_dtype: dtype of the matmul operands (f32 or bf16); accumulation,
      biases, residual add and LeakyReLU always stay in f32.
    - lane_multiple: feature dims are zero-padded to this multiple (128 keeps the
      output lane-dense / MXU-aligned; 256 is preferred on v6e/v7x).
    """
    B, N, in_dim = x.shape
    M = B * N

    w1, b1 = params["w1"], params["b1"]          # (in_dim, hidden), (1, hidden)
    w2, b2 = params["w2"], params["b2"]          # (hidden, out_dim), (1, out_dim)
    has_shortcut = "ws" in params
    hidden_dim = w1.shape[1]
    out_dim = w2.shape[1]

    # --- lane-dense padding of the feature dims (avoids masked vst.msk stores,
    #     keeps K/N of every matmul MXU aligned) ---------------------------------
    K = _round_up(in_dim, lane_multiple)
    H = _round_up(hidden_dim, lane_multiple)
    Np = _round_up(out_dim, lane_multiple)
    if not has_shortcut:                         # identity residual: widths must match
        K = Np = max(K, Np)

    itemsize = jnp.dtype(compute_dtype).itemsize
    row_align = 8 if itemsize == 4 else 16       # sublane tile: (8,128) f32 / (16,128) bf16

    # --- row tile selection: big tiles amortize the ~0.35us/step pipeline overhead,
    #     but stay inside a conservative VMEM budget (v7x has only 64 MiB physical). ---
    w_bytes = (2 * itemsize * (K * H + H * Np + (K * Np if has_shortcut else 0))
               + 2 * 4 * (H + Np + (Np if has_shortcut else 0)))
    per_row = 2 * (K * itemsize + Np * x.dtype.itemsize)     # double-buffered x + out rows
    tm_budget = max(row_align, (vmem_budget_bytes - w_bytes) // max(per_row, 1))
    tm_eff = int(min(tm, tm_budget, _round_up(M, row_align)))
    tm_eff = max(row_align, (tm_eff // row_align) * row_align)
    # keep >= 2 grid steps when M allows it (v7x shards the "parallel" axis over 2 TCs)
    if M > 2 * row_align and pl.cdiv(M, tm_eff) < 2:
        tm_eff = max(row_align, _round_up(pl.cdiv(M, 2), row_align))
    M_pad = _round_up(M, tm_eff)
    grid = (M_pad // tm_eff,)

    # --- pad & cast operands (zero padding is exact: padded rows/cols contribute 0) ---
    def pad2(a, rows, cols, dt):
        a = a.astype(dt)
        return jnp.pad(a, ((0, rows - a.shape[0]), (0, cols - a.shape[1])))

    x2p = pad2(x.reshape(M, in_dim), M_pad, K, compute_dtype)
    w1p = pad2(w1, K, H, compute_dtype)
    b1p = pad2(b1, 1, H, jnp.float32)
    w2p = pad2(w2, H, Np, compute_dtype)
    b2p = pad2(b2, 1, Np, jnp.float32)

    x_spec = pl.BlockSpec((tm_eff, K), lambda i: (i, 0))
    o_spec = pl.BlockSpec((tm_eff, Np), lambda i: (i, 0))
    # Constant index_map -> each weight/bias block is DMA'd once and stays resident.
    # (pl.Buffered(1) would also drop the second buffer; left at default for portability.)
    full2d = lambda arr: pl.BlockSpec(arr.shape, lambda i: (0, 0))

    if has_shortcut:
        ws, bs = params["ws"], params["bs"]      # (in_dim, out_dim), (1, out_dim)
        wsp = pad2(ws, K, Np, compute_dtype)
        bsp = pad2(bs, 1, Np, jnp.float32)
        kernel = functools.partial(_mlp_res_kernel_shortcut, final_act=final_act)
        in_specs = [x_spec, full2d(w1p), full2d(b1p), full2d(w2p), full2d(b2p),
                    full2d(wsp), full2d(bsp)]
        args = (x2p, w1p, b1p, w2p, b2p, wsp, bsp)
    else:
        kernel = functools.partial(_mlp_res_kernel_identity, final_act=final_act)
        in_specs = [x_spec, full2d(w1p), full2d(b1p), full2d(w2p), full2d(b2p)]
        args = (x2p, w1p, b1p, w2p, b2p)

    flops = 2 * M * (in_dim * hidden_dim + hidden_dim * out_dim
                     + (in_dim * out_dim if has_shortcut else 0))
    bytes_accessed = int(
        M_pad * K * itemsize
        + (K * H + H * Np + (K * Np if has_shortcut else 0)) * itemsize
        + (H + Np + (Np if has_shortcut else 0)) * 4
        + M_pad * Np * x.dtype.itemsize)

    out2 = pl.pallas_call(
        kernel,
        out_shape=jax.ShapeDtypeStruct((M_pad, Np), x.dtype),
        grid_spec=pltpu.PrefetchScalarGridSpec(
            num_scalar_prefetch=0,
            grid=grid,
            in_specs=in_specs,
            out_specs=o_spec,
        ),
        compiler_params=pltpu.CompilerParams(
            dimension_semantics=("parallel",)),
        cost_estimate=pl.CostEstimate(flops=flops, transcendentals=0,
                                      bytes_accessed=bytes_accessed),
    )(*args)

    return out2[:M, :out_dim].reshape(B, N, out_dim)


# --------------------------- params / reference ----------------------------- #
def init_params(key, in_dim, hidden_dim, out_dim):
    """Deterministic synthetic parameters. PyTorch Linear stores W as (out, in);
    we store the transpose (in, out) so the kernel does x @ W."""
    k1, k2, k3, k4, k5, k6 = jax.random.split(key, 6)
    params = {
        "w1": jax.random.normal(k1, (in_dim, hidden_dim), jnp.float32) * 0.1,
        "b1": jax.random.normal(k2, (1, hidden_dim), jnp.float32) * 0.1,
        "w2": jax.random.normal(k3, (hidden_dim, out_dim), jnp.float32) * 0.1,
        "b2": jax.random.normal(k4, (1, out_dim), jnp.float32) * 0.1,
    }
    if in_dim != out_dim:
        params["ws"] = jax.random.normal(k5, (in_dim, out_dim), jnp.float32) * 0.1
        params["bs"] = jax.random.normal(k6, (1, out_dim), jnp.float32) * 0.1
    return params


def mlp_res_reference(x, params, *, final_act=True):
    """Pure-JAX reference mirroring the PyTorch forward."""
    h = x @ params["w1"] + params["b1"][0]
    h = jnp.where(h > 0, h, 0.2 * h)
    out = h @ params["w2"] + params["b2"][0]
    if "ws" in params:
        sc = x @ params["ws"] + params["bs"][0]
    else:
        sc = x
    out = out + sc
    if final_act:
        out = jnp.where(out > 0, out, 0.2 * out)
    return out


if __name__ == "__main__":
    key = jax.random.PRNGKey(0)
    kx, kp, kp2 = jax.random.split(key, 3)

    B, N = 2, 8
    in_dim, hidden_dim, out_dim = 32, 64, 48   # in_dim != out_dim -> Linear shortcut
    x = jax.random.normal(kx, (B, N, in_dim), jnp.float32)

    # Case 1: linear shortcut, final_act=True, f32 matmul operands.
    params = init_params(kp, in_dim, hidden_dim, out_dim)
    out = jax.block_until_ready(mlp_res_forward(x, params, final_act=True))
    ref = mlp_res_reference(x, params, final_act=True)
    assert out.shape == (B, N, out_dim)
    assert jnp.allclose(out, ref, atol=1e-5, rtol=1e-5)

    # Case 2: identity shortcut (in_dim == out_dim), final_act=False.
    params_id = init_params(kp2, in_dim, hidden_dim, in_dim)
    out_id = jax.block_until_ready(mlp_res_forward(x, params_id, final_act=False))
    ref_id = mlp_res_reference(x, params_id, final_act=False)
    assert out_id.shape == (B, N, in_dim)
    assert jnp.allclose(out_id, ref_id, atol=1e-5, rtol=1e-5)

    # Case 3: bf16 matmul operands (f32 accumulate / epilogue), loose tolerance.
    out_bf = jax.block_until_ready(
        mlp_res_forward(x, params, final_act=True, compute_dtype=jnp.bfloat16))
    assert out_bf.shape == (B, N, out_dim)
    assert jnp.allclose(out_bf.astype(jnp.float32), ref, atol=1e-1, rtol=1e-1)

    print("KERNEL_OK")
</pallas_src>

<mosaic_0001>
module attributes {stable_mosaic.version = 11 : i64} {
  func.func @_mlp_res_kernel_shortcut(%arg0: i32, %arg1: memref<16x128xf32, #tpu.memory_space<vmem>>, %arg2: memref<128x128xf32, #tpu.memory_space<vmem>>, %arg3: memref<1x128xf32, #tpu.memory_space<vmem>>, %arg4: memref<128x128xf32, #tpu.memory_space<vmem>>, %arg5: memref<1x128xf32, #tpu.memory_space<vmem>>, %arg6: memref<128x128xf32, #tpu.memory_space<vmem>>, %arg7: memref<1x128xf32, #tpu.memory_space<vmem>>, %arg8: memref<16x128xf32, #tpu.memory_space<vmem>>) attributes {dimension_semantics = [#tpu.dimension_semantics<parallel>], iteration_bounds = array<i64: 1>, scalar_prefetch = 0 : i64, scratch_operands = 0 : i64, tpu.core_type = #tpu.core_type<tc>, window_params = [{transform_indices = @transform_0, window_bounds = array<i64: 16, 128>}, {pipeline_mode = #tpu.pipeline_mode<synchronous>, transform_indices = @transform_1, window_bounds = array<i64: 128, 128>}, {pipeline_mode = #tpu.pipeline_mode<synchronous>, transform_indices = @transform_2, window_bounds = array<i64: 1, 128>}, {pipeline_mode = #tpu.pipeline_mode<synchronous>, transform_indices = @transform_3, window_bounds = array<i64: 128, 128>}, {pipeline_mode = #tpu.pipeline_mode<synchronous>, transform_indices = @transform_4, window_bounds = array<i64: 1, 128>}, {pipeline_mode = #tpu.pipeline_mode<synchronous>, transform_indices = @transform_5, window_bounds = array<i64: 128, 128>}, {pipeline_mode = #tpu.pipeline_mode<synchronous>, transform_indices = @transform_6, window_bounds = array<i64: 1, 128>}, {transform_indices = @transform_7, window_bounds = array<i64: 16, 128>}]} {
    %c0 = arith.constant 0 : index
    %c0_0 = arith.constant 0 : index
    %0 = vector.load %arg1[%c0, %c0_0] : memref<16x128xf32, #tpu.memory_space<vmem>>, vector<16x128xf32>
    %c0_1 = arith.constant 0 : index
    %c0_2 = arith.constant 0 : index
    %1 = vector.load %arg2[%c0_1, %c0_2] : memref<128x128xf32, #tpu.memory_space<vmem>>, vector<128x128xf32>
    %cst = arith.constant dense<0.000000e+00> : vector<16x128xf32>
    %2 = tpu.matmul %0, %1, %cst {dimension_numbers = #tpu.dot_dimension_numbers<[1], [0], [0], [1], [0, 0, 1, 1], [], []>} : vector<16x128xf32>, vector<128x128xf32>, vector<16x128xf32> -> vector<16x128xf32>
    %c0_3 = arith.constant 0 : index
    %c0_4 = arith.constant 0 : index
    %3 = vector.load %arg3[%c0_3, %c0_4] : memref<1x128xf32, #tpu.memory_space<vmem>>, vector<1x128xf32>
    %4 = vector.broadcast %3 : vector<1x128xf32> to vector<16x128xf32>
    %5 = arith.addf %2, %4 : vector<16x128xf32>
    %cst_5 = arith.constant 0.000000e+00 : f32
    %6 = vector.broadcast %cst_5 : f32 to vector<16x128xf32>
    %7 = arith.cmpf ogt, %5, %6 : vector<16x128xf32>
    %cst_6 = arith.constant 2.000000e-01 : f32
    %8 = vector.broadcast %cst_6 : f32 to vector<16x128xf32>
    %9 = arith.mulf %8, %5 : vector<16x128xf32>
    %10 = arith.select %7, %5, %9 : vector<16x128xi1>, vector<16x128xf32>
    %c0_7 = arith.constant 0 : index
    %c0_8 = arith.constant 0 : index
    %11 = vector.load %arg4[%c0_7, %c0_8] : memref<128x128xf32, #tpu.memory_space<vmem>>, vector<128x128xf32>
    %cst_9 = arith.constant dense<0.000000e+00> : vector<16x128xf32>
    %12 = tpu.matmul %10, %11, %cst_9 {dimension_numbers = #tpu.dot_dimension_numbers<[1], [0], [0], [1], [0, 0, 1, 1], [], []>} : vector<16x128xf32>, vector<128x128xf32>, vector<16x128xf32> -> vector<16x128xf32>
    %c0_10 = arith.constant 0 : index
    %c0_11 = arith.constant 0 : index
    %13 = vector.load %arg5[%c0_10, %c0_11] : memref<1x128xf32, #tpu.memory_space<vmem>>, vector<1x128xf32>
    %14 = vector.broadcast %13 : vector<1x128xf32> to vector<16x128xf32>
    %15 = arith.addf %12, %14 : vector<16x128xf32>
    %c0_12 = arith.constant 0 : index
    %c0_13 = arith.constant 0 : index
    %16 = vector.load %arg6[%c0_12, %c0_13] : memref<128x128xf32, #tpu.memory_space<vmem>>, vector<128x128xf32>
    %cst_14 = arith.constant dense<0.000000e+00> : vector<16x128xf32>
    %17 = tpu.matmul %0, %16, %cst_14 {dimension_numbers = #tpu.dot_dimension_numbers<[1], [0], [0], [1], [0, 0, 1, 1], [], []>} : vector<16x128xf32>, vector<128x128xf32>, vector<16x128xf32> -> vector<16x128xf32>
    %c0_15 = arith.constant 0 : index
    %c0_16 = arith.constant 0 : index
    %18 = vector.load %arg7[%c0_15, %c0_16] : memref<1x128xf32, #tpu.memory_space<vmem>>, vector<1x128xf32>
    %19 = vector.broadcast %18 : vector<1x128xf32> to vector<16x128xf32>
    %20 = arith.addf %17, %19 : vector<16x128xf32>
    %21 = arith.addf %15, %20 : vector<16x128xf32>
    %cst_17 = arith.constant 0.000000e+00 : f32
    %22 = vector.broadcast %cst_17 : f32 to vector<16x128xf32>
    %23 = arith.cmpf ogt, %21, %22 : vector<16x128xf32>
    %cst_18 = arith.constant 2.000000e-01 : f32
    %24 = vector.broadcast %cst_18 : f32 to vector<16x128xf32>
    %25 = arith.mulf %24, %21 : vector<16x128xf32>
    %26 = arith.select %23, %21, %25 : vector<16x128xi1>, vector<16x128xf32>
    %c0_19 = arith.constant 0 : index
    %c0_20 = arith.constant 0 : index
    %27 = vector.load %arg8[%c0_19, %c0_20] : memref<16x128xf32, #tpu.memory_space<vmem>>, vector<16x128xf32>
    tpu.vector_store %arg8[%c0_19, %c0_20], %26 {strides = array<i32>} : memref<16x128xf32, #tpu.memory_space<vmem>>, vector<16x128xf32>,
    return
  }
  func.func @transform_0(%arg0: i32) -> (i32, i32) {
    %c0_i32 = arith.constant 0 : i32
    %c0_i32_0 = arith.constant 0 : i32
    return %arg0, %c0_i32 : i32, i32
  }
  func.func @transform_1(%arg0: i32) -> (i32, i32) {
    %c0_i32 = arith.constant 0 : i32
    %c0_i32_0 = arith.constant 0 : i32
    %c0_i32_1 = arith.constant 0 : i32
    return %c0_i32, %c0_i32_0 : i32, i32
  }
  func.func @transform_2(%arg0: i32) -> (i32, i32) {
    %c0_i32 = arith.constant 0 : i32
    %c0_i32_0 = arith.constant 0 : i32
    %c0_i32_1 = arith.constant 0 : i32
    return %c0_i32, %c0_i32_0 : i32, i32
  }
  func.func @transform_3(%arg0: i32) -> (i32, i32) {
    %c0_i32 = arith.constant 0 : i32
    %c0_i32_0 = arith.constant 0 : i32
    %c0_i32_1 = arith.constant 0 : i32
    return %c0_i32, %c0_i32_0 : i32, i32
  }
  func.func @transform_4(%arg0: i32) -> (i32, i32) {
    %c0_i32 = arith.constant 0 : i32
    %c0_i32_0 = arith.constant 0 : i32
    %c0_i32_1 = arith.constant 0 : i32
    return %c0_i32, %c0_i32_0 : i32, i32
  }
  func.func @transform_5(%arg0: i32) -> (i32, i32) {
    %c0_i32 = arith.constant 0 : i32
    %c0_i32_0 = arith.constant 0 : i32
    %c0_i32_1 = arith.constant 0 : i32
    return %c0_i32, %c0_i32_0 : i32, i32
  }
  func.func @transform_6(%arg0: i32) -> (i32, i32) {
    %c0_i32 = arith.constant 0 : i32
    %c0_i32_0 = arith.constant 0 : i32
    %c0_i32_1 = arith.constant 0 : i32
    return %c0_i32, %c0_i32_0 : i32, i32
  }
  func.func @transform_7(%arg0: i32) -> (i32, i32) {
    %c0_i32 = arith.constant 0 : i32
    %c0_i32_0 = arith.constant 0 : i32
    return %arg0, %c0_i32 : i32, i32
  }
}

</mosaic_0001>

<llo_original>
// kernel: tpu_custom_call.1
$region0: #{tpu_custom_call.1}
  #allocation0 [shape = 'u32[]', space=smem, size = 0x4, offset = 0x4, fixed_abs, tag = 'smem constant byte address 0x4 - core index']
  #allocation1 [shape = 'u32[144,128]{1,0:T(1,128)}', space=vmem, size = 0x12000, scoped, tag = 'internal scratch']
  %s0 = inlined_call_operand.hbm [shape: f32[16,128], index: 0, kind: input, shape index: {}]
  %s1 = inlined_call_operand.hbm [shape: f32[128,128], index: 1, kind: input, shape index: {}]
  %s2 = inlined_call_operand.vmem [shape: f32[1,128], index: 2, kind: input, shape index: {}]
  %s3 = inlined_call_operand.hbm [shape: f32[128,128], index: 3, kind: input, shape index: {}]
  %s4 = inlined_call_operand.vmem [shape: f32[1,128], index: 4, kind: input, shape index: {}]
  %s5 = inlined_call_operand.hbm [shape: f32[128,128], index: 5, kind: input, shape index: {}]
  %s6 = inlined_call_operand.vmem [shape: f32[1,128], index: 6, kind: input, shape index: {}]
  %s7 = inlined_call_operand.hbm [shape: f32[16,128], index: 7, kind: output, shape index: {}]
  %s8 = sld [smem:[#allocation0]]
  $region54: #{tpu_custom_call.1} parent=0
    _
  %s10 = ssub.s32 1, %s8
  %s11 = scalar_select 0, %s10, %s8
  $region1: #{tpu_custom_call.1} parent=0
    #allocation2 [shape = 'u8[8192]{0}', space=vmem, size = 0x2000, scoped, tag = 'input window, operand 0, single buffered']
    #allocation3 [shape = 's32[1]{0}', space=sflag, size = 0x4, scoped, tag = 'scoped memory for tpu_custom_call.1']
    #allocation4 [shape = 's32[1]{0}', space=sflag, size = 0x4, scoped, tag = 'scoped memory for tpu_custom_call.1']
    #allocation5 [shape = 'u8[65536]{0}', space=vmem, size = 0x10000, scoped, tag = 'input window, operand 1, single buffered']
    #allocation6 [shape = 's32[1]{0}', space=sflag, size = 0x4, scoped, tag = 'scoped memory for tpu_custom_call.1']
    #allocation7 [shape = 'u8[65536]{0}', space=vmem, size = 0x10000, scoped, tag = 'input window, operand 3, single buffered']
    #allocation8 [shape = 'u8[65536]{0}', space=vmem, size = 0x10000, scoped, tag = 'input window, operand 5, single buffered']
    #allocation9 [shape = 's32[1]{0}', space=sflag, size = 0x4, scoped, tag = 'scoped memory for tpu_custom_call.1']
    #allocation10 [shape = 'u8[8192]{0}', space=vmem, size = 0x2000, scoped, tag = 'output window, operand 0, single buffered']
    %12 = vsyncpa [#allocation3], 0
    %13 = vsyncpa [#allocation6], 0
    %14 = vsyncpa [#allocation9], 0
    %15 = vsyncpa [#allocation4], 0
    // Predicated region
    $region2: #{tpu_custom_call.1} parent=1 // pred_check
      _
    $region3: #{tpu_custom_call.1} parent=1 // pred_check_branch
      %17 = sbr.rel (0) target = $region5
    $region4: #{tpu_custom_call.1} parent=1 // pred_region
      %s19 = ssub.s32 256, 256
      %20 = vsyncadd [#allocation3], %s19
      %s21 = sshll.u32 [#allocation2], 4
      %s22 = int_to_ptr.vmem [resolvable:$true] %s21
      %27 = dma.hbm_to_vmem [thread:$0]  %s0, 256, %s22, [#allocation3], 128, 128, 8
    $region5: #{tpu_custom_call.1} parent=1 // pred_fallthru
      _
    // Predicated region
    $region6: #{tpu_custom_call.1} parent=1 // pred_check
      _
    $region7: #{tpu_custom_call.1} parent=1 // pred_check_branch
      %29 = sbr.rel (0) target = $region9
    $region8: #{tpu_custom_call.1} parent=1 // pred_region
      %s31 = ssub.s32 2048, 2048
      %32 = vsyncadd [#allocation6], %s31
      %s33 = sshll.u32 [#allocation5], 4
      %s34 = int_to_ptr.vmem [resolvable:$true] %s33
      %39 = dma.hbm_to_vmem [thread:$0]  %s1, 2048, %s34, [#allocation6], 128, 128, 8
    $region9: #{tpu_custom_call.1} parent=1 // pred_fallthru
      _
    // Predicated region
    $region10: #{tpu_custom_call.1} parent=1 // pred_check
      _
    $region11: #{tpu_custom_call.1} parent=1 // pred_check_branch
      %41 = sbr.rel (0) target = $region13
    $region12: #{tpu_custom_call.1} parent=1 // pred_region
      _
    $region13: #{tpu_custom_call.1} parent=1 // pred_fallthru
      _
    // Predicated region
    $region14: #{tpu_custom_call.1} parent=1 // pred_check
      _
    $region15: #{tpu_custom_call.1} parent=1 // pred_check_branch
      %43 = sbr.rel (0) target = $region17
    $region16: #{tpu_custom_call.1} parent=1 // pred_region
      %s45 = ssub.s32 2048, 2048
      %46 = vsyncadd [#allocation6], %s45
      %s47 = sshll.u32 [#allocation7], 4
      %s48 = int_to_ptr.vmem [resolvable:$true] %s47
      %53 = dma.hbm_to_vmem [thread:$0]  %s3, 2048, %s48, [#allocation6], 128, 128, 8
    $region17: #{tpu_custom_call.1} parent=1 // pred_fallthru
      _
    // Predicated region
    $region18: #{tpu_custom_call.1} parent=1 // pred_check
      _
    $region19: #{tpu_custom_call.1} parent=1 // pred_check_branch
      %55 = sbr.rel (0) target = $region21
    $region20: #{tpu_custom_call.1} parent=1 // pred_region
      _
    $region21: #{tpu_custom_call.1} parent=1 // pred_fallthru
      _
    // Predicated region
    $region22: #{tpu_custom_call.1} parent=1 // pred_check
      _
    $region23: #{tpu_custom_call.1} parent=1 // pred_check_branch
      %57 = sbr.rel (0) target = $region25
    $region24: #{tpu_custom_call.1} parent=1 // pred_region
      %s59 = ssub.s32 2048, 2048
      %60 = vsyncadd [#allocation9], %s59
      %s61 = sshll.u32 [#allocation8], 4
      %s62 = int_to_ptr.vmem [resolvable:$true] %s61
      %67 = dma.hbm_to_vmem [thread:$0]  %s5, 2048, %s62, [#allocation9], 128, 128, 8
    $region25: #{tpu_custom_call.1} parent=1 // pred_fallthru
      _
    // Predicated region
    $region26: #{tpu_custom_call.1} parent=1 // pred_check
      _
    $region27: #{tpu_custom_call.1} parent=1 // pred_check_branch
      %69 = sbr.rel (0) target = $region29
    $region28: #{tpu_custom_call.1} parent=1 // pred_region
      _
    $region29: #{tpu_custom_call.1} parent=1 // pred_fallthru
      _
    // Predicated region
    $region30: #{tpu_custom_call.1} parent=1 // pred_check
      _
    $region31: #{tpu_custom_call.1} parent=1 // pred_check_branch
      %71 = sbr.rel (0) target = $region33
    $region32: #{tpu_custom_call.1} parent=1 // pred_region
      %72 = dma.done [#allocation3], 256
    $region33: #{tpu_custom_call.1} parent=1 // pred_fallthru
      _
    // Predicated region
    $region34: #{tpu_custom_call.1} parent=1 // pred_check
      _
    $region35: #{tpu_custom_call.1} parent=1 // pred_check_branch
      %74 = sbr.rel (0) target = $region37
    $region36: #{tpu_custom_call.1} parent=1 // pred_region
      %75 = dma.done [#allocation6], 2048
    $region37: #{tpu_custom_call.1} parent=1 // pred_fallthru
      _
    // Predicated region
    $region38: #{tpu_custom_call.1} parent=1 // pred_check
      _
    $region39: #{tpu_custom_call.1} parent=1 // pred_check_branch
      %77 = sbr.rel (0) target = $region41
    $region40: #{tpu_custom_call.1} parent=1 // pred_region
      %78 = dma.done [#allocation6], 2048
    $region41: #{tpu_custom_call.1} parent=1 // pred_fallthru
      _
    // Predicated region
    $region42: #{tpu_custom_call.1} parent=1 // pred_check
      _
    $region43: #{tpu_custom_call.1} parent=1 // pred_check_branch
      %80 = sbr.rel (0) target = $region45
    $region44: #{tpu_custom_call.1} parent=1 // pred_region
      %81 = dma.done [#allocation9], 2048
    $region45: #{tpu_custom_call.1} parent=1 // pred_fallthru
      _
    %v82 = vld [vmem:[#allocation2] sm:$0xff]
    %v83 = vld [vmem:[#allocation2 + $0x8] sm:$0xff]
    %v84 = vld [vmem:[#allocation5] sm:$0xff]
    %v85 = vld [vmem:[#allocation5 + $0x8] sm:$0xff]
    %v86 = vld [vmem:[#allocation5 + $0x10] sm:$0xff]
    %v87 = vld [vmem:[#allocation5 + $0x18] sm:$0xff]
    %v88 = vld [vmem:[#allocation5 + $0x20] sm:$0xff]
    %v89 = vld [vmem:[#allocation5 + $0x28] sm:$0xff]
    %v90 = vld [vmem:[#allocation5 + $0x30] sm:$0xff]
    %v91 = vld [vmem:[#allocation5 + $0x38] sm:$0xff]
    %v92 = vld [vmem:[#allocation5 + $0x40] sm:$0xff]
    %v93 = vld [vmem:[#allocation5 + $0x48] sm:$0xff]
    %v94 = vld [vmem:[#allocation5 + $0x50] sm:$0xff]
    %v95 = vld [vmem:[#allocation5 + $0x58] sm:$0xff]
    %v96 = vld [vmem:[#allocation5 + $0x60] sm:$0xff]
    %v97 = vld [vmem:[#allocation5 + $0x68] sm:$0xff]
    %v98 = vld [vmem:[#allocation5 + $0x70] sm:$0xff]
    %v99 = vld [vmem:[#allocation5 + $0x78] sm:$0xff]
    %v100 = vld [vmem:[%s2] sm:$0x1]
    %v102 = vlaneseq
    %v103 = vshrl.u32 %v102, 7
    %v104 = vsub.s32 0, %v103
    %v105 = vrot.slane %v100, %v104
    %107 = vmatprep.subr.mxu0 0.0
    %108 = vmatpush1.msra.mxu0 %v84
    %109 = vmatprep.subr.mxu0 0.0
    %110 = vmatpush1.msra.mxu0 %v85
    %111 = vmatprep.subr.mxu0 0.0
    %112 = vmatpush1.msra.mxu0 %v86
    %113 = vmatprep.subr.mxu0 0.0
    %114 = vmatpush1.msra.mxu0 %v87
    %115 = vmatprep.subr.mxu0 0.0
    %116 = vmatpush1.msra.mxu0 %v88
    %117 = vmatprep.subr.mxu0 0.0
    %118 = vmatpush1.msra.mxu0 %v89
    %119 = vmatprep.subr.mxu0 0.0
    %120 = vmatpush1.msra.mxu0 %v90
    %121 = vmatprep.subr.mxu0 0.0
    %122 = vmatpush1.msra.mxu0 %v91
    %123 = vmatprep.subr.mxu0 0.0
    %124 = vmatpush1.msra.mxu0 %v92
    %125 = vmatprep.subr.mxu0 0.0
    %126 = vmatpush1.msra.mxu0 %v93
    %127 = vmatprep.subr.mxu0 0.0
    %128 = vmatpush1.msra.mxu0 %v94
    %129 = vmatprep.subr.mxu0 0.0
    %130 = vmatpush1.msra.mxu0 %v95
    %131 = vmatprep.subr.mxu0 0.0
    %132 = vmatpush1.msra.mxu0 %v96
    %133 = vmatprep.subr.mxu0 0.0
    %134 = vmatpush1.msra.mxu0 %v97
    %135 = vmatprep.subr.mxu0 0.0
    %136 = vmatpush1.msra.mxu0 %v98
    %137 = vmatprep.subr.mxu0 0.0
    %138 = vmatpush1.msra.mxu0 %v99
    %139 = vmatprep.subr.mxu0 0.0
    %140 = vmatpush1.msra.mxu0 0.0
    %141 = vmatprep.subr.mxu0 0.0
    %142 = vmatpush1.msra.mxu0 0.0
    %143 = vmatprep.subr.mxu0 0.0
    %144 = vmatpush1.msra.mxu0 0.0
    %145 = vmatprep.subr.mxu0 0.0
    %146 = vmatpush1.msra.mxu0 0.0
    %147 = vmatprep.subr.mxu0 0.0
    %148 = vmatpush1.msra.mxu0 0.0
    %149 = vmatprep.subr.mxu0 0.0
    %150 = vmatpush1.msra.mxu0 0.0
    %151 = vmatprep.subr.mxu0 0.0
    %152 = vmatpush1.msra.mxu0 0.0
    %153 = vmatprep.subr.mxu0 0.0
    %154 = vmatpush1.msra.mxu0 0.0
    %155 = vmatprep.subr.mxu0 0.0
    %156 = vmatpush1.msra.mxu0 0.0
    %157 = vmatprep.subr.mxu0 0.0
    %158 = vmatpush1.msra.mxu0 0.0
    %159 = vmatprep.subr.mxu0 0.0
    %160 = vmatpush1.msra.mxu0 0.0
    %161 = vmatprep.subr.mxu0 0.0
    %162 = vmatpush1.msra.mxu0 0.0
    %163 = vmatprep.subr.mxu0 0.0
    %164 = vmatpush1.msra.mxu0 0.0
    %165 = vmatprep.subr.mxu0 0.0
    %166 = vmatpush1.msra.mxu0 0.0
    %167 = vmatprep.subr.mxu0 0.0
    %168 = vmatpush1.msra.mxu0 0.0
    %169 = vmatprep.subr.mxu0 0.0
    %170 = vmatpush1.msra.mxu0 0.0
    %171 = vmatprep.mubr.f32.mxu0 0.0
    %172 = vmatmul.mubr.f32.gmra.mrb[0].mxu0 %v82
    %v173 = vpop.f32.mrb[0].mxu0
    %v174 = vadd.f32 %v105, %v173
    %v175 = vpop.f32.mrb[0].mxu0
    %176 = vmatprep.mubr.f32.mxu0 0.0
    %177 = vmatmul.mubr.f32.gmra.mrb[0].mxu0 %v83
    %v178 = vpop.f32.mrb[0].mxu0
    %v179 = vadd.f32 %v105, %v178
    %v180 = vpop.f32.mrb[0].mxu0
    %181 = vdwg.mxu0
    %vm182 = vcmp.gt.f32.partialorder %v174, 0.0
    %vm183 = vcmp.gt.f32.partialorder %v179, 0.0
    %v184 = vmul.f32 %v174, 0.2
    %v185 = vmul.f32 %v179, 0.2
    %v186 = vsel %vm182, %v174, %v184
    %v187 = vsel %vm183, %v179, %v185
    %v188 = vld [vmem:[#allocation7] sm:$0xff]
    %v189 = vld [vmem:[#allocation7 + $0x8] sm:$0xff]
    %v190 = vld [vmem:[#allocation7 + $0x10] sm:$0xff]
    %v191 = vld [vmem:[#allocation7 + $0x18] sm:$0xff]
    %v192 = vld [vmem:[#allocation7 + $0x20] sm:$0xff]
    %v193 = vld [vmem:[#allocation7 + $0x28] sm:$0xff]
    %v194 = vld [vmem:[#allocation7 + $0x30] sm:$0xff]
    %v195 = vld [vmem:[#allocation7 + $0x38] sm:$0xff]
    %v196 = vld [vmem:[#allocation7 + $0x40] sm:$0xff]
    %v197 = vld [vmem:[#allocation7 + $0x48] sm:$0xff]
    %v198 = vld [vmem:[#allocation7 + $0x50] sm:$0xff]
    %v199 = vld [vmem:[#allocation7 + $0x58] sm:$0xff]
    %v200 = vld [vmem:[#allocation7 + $0x60] sm:$0xff]
    %v201 = vld [vmem:[#allocation7 + $0x68] sm:$0xff]
    %v202 = vld [vmem:[#allocation7 + $0x70] sm:$0xff]
    %v203 = vld [vmem:[#allocation7 + $0x78] sm:$0xff]
    %v204 = vld [vmem:[%s4] sm:$0x1]
    %v206 = vlaneseq
    %v207 = vshrl.u32 %v206, 7
    %v208 = vsub.s32 0, %v207
    %v209 = vrot.slane %v204, %v208
    %211 = vmatprep.subr.mxu0 0.0
    %212 = vmatpush1.msra.mxu0 %v188
    %213 = vmatprep.subr.mxu0 0.0
    %214 = vmatpush1.msra.mxu0 %v189
    %215 = vmatprep.subr.mxu0 0.0
    %216 = vmatpush1.msra.mxu0 %v190
    %217 = vmatprep.subr.mxu0 0.0
    %218 = vmatpush1.msra.mxu0 %v191
    %219 = vmatprep.subr.mxu0 0.0
    %220 = vmatpush1.msra.mxu0 %v192
    %221 = vmatprep.subr.mxu0 0.0
    %222 = vmatpush1.msra.mxu0 %v193
    %223 = vmatprep.subr.mxu0 0.0
    %224 = vmatpush1.msra.mxu0 %v194
    %225 = vmatprep.subr.mxu0 0.0
    %226 = vmatpush1.msra.mxu0 %v195
    %227 = vmatprep.subr.mxu0 0.0
    %228 = vmatpush1.msra.mxu0 %v196
    %229 = vmatprep.subr.mxu0 0.0
    %230 = vmatpush1.msra.mxu0 %v197
    %231 = vmatprep.subr.mxu0 0.0
    %232 = vmatpush1.msra.mxu0 %v198
    %233 = vmatprep.subr.mxu0 0.0
    %234 = vmatpush1.msra.mxu0 %v199
    %235 = vmatprep.subr.mxu0 0.0
    %236 = vmatpush1.msra.mxu0 %v200
    %237 = vmatprep.subr.mxu0 0.0
    %238 = vmatpush1.msra.mxu0 %v201
    %239 = vmatprep.subr.mxu0 0.0
    %240 = vmatpush1.msra.mxu0 %v202
    %241 = vmatprep.subr.mxu0 0.0
    %242 = vmatpush1.msra.mxu0 %v203
    %243 = vmatprep.subr.mxu0 0.0
    %244 = vmatpush1.msra.mxu0 0.0
    %245 = vmatprep.subr.mxu0 0.0
    %246 = vmatpush1.msra.mxu0 0.0
    %247 = vmatprep.subr.mxu0 0.0
    %248 = vmatpush1.msra.mxu0 0.0
    %249 = vmatprep.subr.mxu0 0.0
    %250 = vmatpush1.msra.mxu0 0.0
    %251 = vmatprep.subr.mxu0 0.0
    %252 = vmatpush1.msra.mxu0 0.0
    %253 = vmatprep.subr.mxu0 0.0
    %254 = vmatpush1.msra.mxu0 0.0
    %255 = vmatprep.subr.mxu0 0.0
    %256 = vmatpush1.msra.mxu0 0.0
    %257 = vmatprep.subr.mxu0 0.0
    %258 = vmatpush1.msra.mxu0 0.0
    %259 = vmatprep.subr.mxu0 0.0
    %260 = vmatpush1.msra.mxu0 0.0
    %261 = vmatprep.subr.mxu0 0.0
    %262 = vmatpush1.msra.mxu0 0.0
    %263 = vmatprep.subr.mxu0 0.0
    %264 = vmatpush1.msra.mxu0 0.0
    %265 = vmatprep.subr.mxu0 0.0
    %266 = vmatpush1.msra.mxu0 0.0
    %267 = vmatprep.subr.mxu0 0.0
    %268 = vmatpush1.msra.mxu0 0.0
    %269 = vmatprep.subr.mxu0 0.0
    %270 = vmatpush1.msra.mxu0 0.0
    %271 = vmatprep.subr.mxu0 0.0
    %272 = vmatpush1.msra.mxu0 0.0
    %273 = vmatprep.subr.mxu0 0.0
    %274 = vmatpush1.msra.mxu0 0.0
    %275 = vmatprep.mubr.f32.mxu0 0.0
    %276 = vmatmul.mubr.f32.gmra.mrb[0].mxu0 %v186
    %v277 = vpop.f32.mrb[0].mxu0
    %v278 = vadd.f32 %v209, %v277
    %v279 = vpop.f32.mrb[0].mxu0
    %280 = vmatprep.mubr.f32.mxu0 0.0
    %281 = vmatmul.mubr.f32.gmra.mrb[0].mxu0 %v187
    %v282 = vpop.f32.mrb[0].mxu0
    %v283 = vadd.f32 %v209, %v282
    %v284 = vpop.f32.mrb[0].mxu0
    %285 = vdwg.mxu0
    %v286 = vld [vmem:[#allocation8] sm:$0xff]
    %v287 = vld [vmem:[#allocation8 + $0x8] sm:$0xff]
    %v288 = vld [vmem:[#allocation8 + $0x10] sm:$0xff]
    %v289 = vld [vmem:[#allocation8 + $0x18] sm:$0xff]
    %v290 = vld [vmem:[#allocation8 + $0x20] sm:$0xff]
    %v291 = vld [vmem:[#allocation8 + $0x28] sm:$0xff]
    %v292 = vld [vmem:[#allocation8 + $0x30] sm:$0xff]
    %v293 = vld [vmem:[#allocation8 + $0x38] sm:$0xff]
    %v294 = vld [vmem:[#allocation8 + $0x40] sm:$0xff]
    %v295 = vld [vmem:[#allocation8 + $0x48] sm:$0xff]
    %v296 = vld [vmem:[#allocation8 + $0x50] sm:$0xff]
    %v297 = vld [vmem:[#allocation8 + $0x58] sm:$0xff]
    %v298 = vld [vmem:[#allocation8 + $0x60] sm:$0xff]
    %v299 = vld [vmem:[#allocation8 + $0x68] sm:$0xff]
    %v300 = vld [vmem:[#allocation8 + $0x70] sm:$0xff]
    %v301 = vld [vmem:[#allocation8 + $0x78] sm:$0xff]
    %v302 = vld [vmem:[%s6] sm:$0x1]
    %v304 = vlaneseq
    %v305 = vshrl.u32 %v304, 7
    %v306 = vsub.s32 0, %v305
    %v307 = vrot.slane %v302, %v306
    %309 = vmatprep.subr.mxu0 0.0
    %310 = vmatpush1.msra.mxu0 %v286
    %311 = vmatprep.subr.mxu0 0.0
    %312 = vmatpush1.msra.mxu0 %v287
    %313 = vmatprep.subr.mxu0 0.0
    %314 = vmatpush1.msra.mxu0 %v288
    %315 = vmatprep.subr.mxu0 0.0
    %316 = vmatpush1.msra.mxu0 %v289
    %317 = vmatprep.subr.mxu0 0.0
    %318 = vmatpush1.msra.mxu0 %v290
    %319 = vmatprep.subr.mxu0 0.0
    %320 = vmatpush1.msra.mxu0 %v291
    %321 = vmatprep.subr.mxu0 0.0
    %322 = vmatpush1.msra.mxu0 %v292
    %323 = vmatprep.subr.mxu0 0.0
    %324 = vmatpush1.msra.mxu0 %v293
    %325 = vmatprep.subr.mxu0 0.0
    %326 = vmatpush1.msra.mxu0 %v294
    %327 = vmatprep.subr.mxu0 0.0
    %328 = vmatpush1.msra.mxu0 %v295
    %329 = vmatprep.subr.mxu0 0.0
    %330 = vmatpush1.msra.mxu0 %v296
    %331 = vmatprep.subr.mxu0 0.0
    %332 = vmatpush1.msra.mxu0 %v297
    %333 = vmatprep.subr.mxu0 0.0
    %334 = vmatpush1.msra.mxu0 %v298
    %335 = vmatprep.subr.mxu0 0.0
    %336 = vmatpush1.msra.mxu0 %v299
    %337 = vmatprep.subr.mxu0 0.0
    %338 = vmatpush1.msra.mxu0 %v300
    %339 = vmatprep.subr.mxu0 0.0
    %340 = vmatpush1.msra.mxu0 %v301
    %341 = vmatprep.subr.mxu0 0.0
    %342 = vmatpush1.msra.mxu0 0.0
    %343 = vmatprep.subr.mxu0 0.0
    %344 = vmatpush1.msra.mxu0 0.0
    %345 = vmatprep.subr.mxu0 0.0
    %346 = vmatpush1.msra.mxu0 0.0
    %347 = vmatprep.subr.mxu0 0.0
    %348 = vmatpush1.msra.mxu0 0.0
    %349 = vmatprep.subr.mxu0 0.0
    %350 = vmatpush1.msra.mxu0 0.0
    %351 = vmatprep.subr.mxu0 0.0
    %352 = vmatpush1.msra.mxu0 0.0
    %353 = vmatprep.subr.mxu0 0.0
    %354 = vmatpush1.msra.mxu0 0.0
    %355 = vmatprep.subr.mxu0 0.0
    %356 = vmatpush1.msra.mxu0 0.0
    %357 = vmatprep.subr.mxu0 0.0
    %358 = vmatpush1.msra.mxu0 0.0
    %359 = vmatprep.subr.mxu0 0.0
    %360 = vmatpush1.msra.mxu0 0.0
    %361 = vmatprep.subr.mxu0 0.0
    %362 = vmatpush1.msra.mxu0 0.0
    %363 = vmatprep.subr.mxu0 0.0
    %364 = vmatpush1.msra.mxu0 0.0
    %365 = vmatprep.subr.mxu0 0.0
    %366 = vmatpush1.msra.mxu0 0.0
    %367 = vmatprep.subr.mxu0 0.0
    %368 = vmatpush1.msra.mxu0 0.0
    %369 = vmatprep.subr.mxu0 0.0
    %370 = vmatpush1.msra.mxu0 0.0
    %371 = vmatprep.subr.mxu0 0.0
    %372 = vmatpush1.msra.mxu0 0.0
    %373 = vmatprep.mubr.f32.mxu0 0.0
    %374 = vmatmul.mubr.f32.gmra.mrb[0].mxu0 %v82
    %v375 = vpop.f32.mrb[0].mxu0
    %v376 = vadd.f32 %v307, %v375
    %v377 = vpop.f32.mrb[0].mxu0
    %378 = vmatprep.mubr.f32.mxu0 0.0
    %379 = vmatmul.mubr.f32.gmra.mrb[0].mxu0 %v83
    %v380 = vpop.f32.mrb[0].mxu0
    %v381 = vadd.f32 %v307, %v380
    %v382 = vpop.f32.mrb[0].mxu0
    %383 = vdwg.mxu0
    %v384 = vadd.f32 %v278, %v376
    %v385 = vadd.f32 %v283, %v381
    %vm386 = vcmp.gt.f32.partialorder %v384, 0.0
    %vm387 = vcmp.gt.f32.partialorder %v385, 0.0
    %v388 = vmul.f32 %v384, 0.2
    %v389 = vmul.f32 %v385, 0.2
    %v390 = vsel %vm386, %v384, %v388
    %v391 = vsel %vm387, %v385, %v389
    %392 = vst [vmem:[#allocation10] sm:$0xff] %v390
    %393 = vst [vmem:[#allocation10 + $0x8] sm:$0xff] %v391
    // Predicated region
    $region46: #{tpu_custom_call.1} parent=1 // pred_check
      _
    $region47: #{tpu_custom_call.1} parent=1 // pred_check_branch
      %395 = sbr.rel (0) target = $region49
    $region48: #{tpu_custom_call.1} parent=1 // pred_region
      %s397 = ssub.s32 256, 256
      %398 = vsyncadd [#allocation4], %s397
      %s399 = sshll.u32 [#allocation10], 4
      %s400 = int_to_ptr.vmem [resolvable:$true] %s399
      %405 = dma.vmem_to_hbm [thread:$0]  %s400, 256, %s7, [#allocation4], 128, 128, 8
    $region49: #{tpu_custom_call.1} parent=1 // pred_fallthru
      _
    // Predicated region
    $region50: #{tpu_custom_call.1} parent=1 // pred_check
      _
    $region51: #{tpu_custom_call.1} parent=1 // pred_check_branch
      %407 = sbr.rel (0) target = $region53
    $region52: #{tpu_custom_call.1} parent=1 // pred_region
      %408 = dma.done [#allocation4], 256
    $region53: #{tpu_custom_call.1} parent=1 // pred_fallthru
      _
    %409 = vsyncpa [#allocation3], 1
    %410 = vsyncpa [#allocation6], 1
    %411 = vsyncpa [#allocation9], 1
    %412 = vsyncpa [#allocation4], 1

</llo_original>
